<compile_context>
chip_gen: v7x
topology: tpu7x:2x2x1
jax: 0.10.0
libtpu: 0.0.40
codegen_flags: <defaults>
</compile_context>

<pallas_src>
import functools

import jax
import jax.numpy as jnp
import numpy as np
from jax.experimental import pallas as pl
from jax.experimental.pallas import tpu as pltpu


# ----------------------------- Pallas kernel --------------------------------
def _valuenet_kernel(obs_ref, w1_ref, b1_ref, w2_ref, b2_ref, w3_ref, out_ref):
    """Fused 3-layer MLP in feature-major layout.

    obs_ref : (obs_dim, tb) bf16     -- batch on the lane axis
    w1_ref  : (hidden, obs_dim) bf16
    w2_ref  : (hidden, hidden) bf16
    b1/b2   : (hidden, 1) f32        -- broadcast along batch lanes
    w3_ref  : (hidden, 1) f32        -- fc3 weight column (VPU path)
    out_ref : (1, tb) f32            -- lane-dense value row
    """
    x = obs_ref[...]                                             # bf16

    # fc1 + ReLU : bf16 MXU matmul, f32 accumulate.
    h1 = jnp.dot(w1_ref[...], x, preferred_element_type=jnp.float32)
    h1 = jnp.maximum(h1 + b1_ref[...], 0.0)                      # f32 (H, tb)

    # fc2 + ReLU : cast activation to bf16 right before the MXU.
    h2 = jnp.dot(w2_ref[...], h1.astype(jnp.bfloat16),
                 preferred_element_type=jnp.float32)
    h2 = jnp.maximum(h2 + b2_ref[...], 0.0)                      # f32 (H, tb)

    # fc3 (single output feature): VPU multiply + sublane reduction.  Result
    # is already a lane-dense (1, tb) row -> unmasked full-width stores, and
    # the MXU slot stays free of a nearly-empty matmul.
    val = jnp.sum(h2 * w3_ref[...], axis=0, keepdims=True)       # (1, tb)
    out_ref[...] = val.astype(out_ref.dtype)


def _round_up(x, m):
    return (x + m - 1) // m * m


@functools.partial(jax.jit, static_argnames=("tile_b",))
def valuenet_forward(obs, params, tile_b=1024):
    """obs: (B, obs_dim) float32. Returns (B, 1) float32."""
    w1, b1, w2, b2, w3, b3 = params
    B, obs_dim = obs.shape

    # 128-aligned batch tile, as large as requested, but capped so the grid
    # has >= 2 steps whenever the batch is big enough to split (v7x dual-TC
    # sharding via the "parallel" axis); v5e/v6e just see a big tile.
    tb = _round_up(min(tile_b, B), 128)
    tb = min(tb, _round_up((B + 1) // 2, 128))
    tb = max(tb, 128)
    B_pad = _round_up(B, tb)
    n_tiles = B_pad // tb

    # Feature-major (transposed) activations: batch on lanes.  Pad + transpose
    # + bf16 cast happen once in XLA (obs is tiny next to the weights).
    obs_t = jnp.pad(obs, ((0, B_pad - B), (0, 0))).T.astype(jnp.bfloat16)

    out = pl.pallas_call(
        _valuenet_kernel,
        out_shape=jax.ShapeDtypeStruct((1, B_pad), jnp.float32),
        grid=(n_tiles,),
        in_specs=[
            pl.BlockSpec((obs_dim, tb), lambda i: (0, i)),  # obs: tiled over B
            pl.BlockSpec(w1.shape, lambda i: (0, 0)),       # weights resident
            pl.BlockSpec(b1.shape, lambda i: (0, 0)),
            pl.BlockSpec(w2.shape, lambda i: (0, 0)),
            pl.BlockSpec(b2.shape, lambda i: (0, 0)),
            pl.BlockSpec(w3.shape, lambda i: (0, 0)),
        ],
        out_specs=pl.BlockSpec((1, tb), lambda i: (0, i)),  # lane-dense row
        compiler_params=pltpu.CompilerParams(
            dimension_semantics=("parallel",),
        ),
    )(obs_t, w1, b1, w2, b2, w3)

    # (1, B_pad) lane row -> (B, 1) column; fc3 bias (a single scalar) is added
    # here instead of being a padded (8,128) VMEM block inside the kernel.
    return out[0, :B].reshape(B, 1) + b3


# --------------------------- parameter init ----------------------------------
def _orthogonal(key, out_features, in_features, gain):
    """Matches nn.init.orthogonal_ semantics for a (out, in) weight matrix."""
    rows, cols = out_features, in_features
    a = jax.random.normal(key, (max(rows, cols), min(rows, cols)), jnp.float32)
    q, r = jnp.linalg.qr(a)
    q = q * jnp.sign(jnp.diagonal(r))  # make decomposition unique
    if rows < cols:
        q = q.T
    return gain * q[:rows, :cols]


def init_valuenet_params(key, obs_dim, hidden_dim=128):
    k1, k2, k3, kb1, kb2, kb3 = jax.random.split(key, 6)

    # PyTorch Linear bias default: uniform(-1/sqrt(fan_in), 1/sqrt(fan_in)),
    # stored as (out_features, 1) columns for the feature-major kernel layout.
    def bias(k, fan_in, n):
        bound = 1.0 / np.sqrt(fan_in)
        return jax.random.uniform(k, (n, 1), jnp.float32, -bound, bound)

    w1 = _orthogonal(k1, hidden_dim, obs_dim, gain=float(np.sqrt(2.0)))   # (H, obs)
    w2 = _orthogonal(k2, hidden_dim, hidden_dim, gain=float(np.sqrt(2.0)))
    w3 = _orthogonal(k3, 1, hidden_dim, gain=1.0)                         # (1, H)

    b1 = bias(kb1, obs_dim, hidden_dim)      # (H, 1)
    b2 = bias(kb2, hidden_dim, hidden_dim)   # (H, 1)
    b3 = bias(kb3, hidden_dim, 1)            # (1, 1)

    # W1/W2 kept in PyTorch (out, in) layout but stored bf16 for single-pass
    # MXU matmuls against (in, batch) activations; W3 stored as an f32
    # (hidden, 1) column for the VPU multiply + sublane-reduce final layer.
    return (w1.astype(jnp.bfloat16), b1,
            w2.astype(jnp.bfloat16), b2,
            w3.T, b3)


# ------------------------------ reference ------------------------------------
def valuenet_ref(obs, params):
    """Pure-JAX reference using the same (bf16-stored) weights, f32 math."""
    w1, b1, w2, b2, w3, b3 = params
    x = jnp.maximum(obs @ w1.astype(jnp.float32).T + b1.T, 0.0)
    x = jnp.maximum(x @ w2.astype(jnp.float32).T + b2.T, 0.0)
    return x @ w3 + b3


# --------------------------------- main ---------------------------------------
if __name__ == "__main__":
    key = jax.random.PRNGKey(0)
    k_obs, k_obs2, k_params = jax.random.split(key, 3)

    obs_dim = 16
    hidden_dim = 128
    params = init_valuenet_params(k_params, obs_dim, hidden_dim)

    # Small batch (single tile) — the typical RL value-net call.
    obs_small = jax.random.normal(k_obs, (8, obs_dim), jnp.float32)
    out_small = jax.block_until_ready(valuenet_forward(obs_small, params))
    assert out_small.shape == (8, 1), out_small.shape
    np.testing.assert_allclose(np.asarray(out_small),
                               np.asarray(valuenet_ref(obs_small, params)),
                               rtol=5e-2, atol=5e-2)   # bf16 MXU tolerance

    # Larger, non-tile-multiple batch — exercises the multi-tile grid + padding.
    obs_big = jax.random.normal(k_obs2, (300, obs_dim), jnp.float32)
    out_big = jax.block_until_ready(valuenet_forward(obs_big, params))
    assert out_big.shape == (300, 1), out_big.shape
    np.testing.assert_allclose(np.asarray(out_big),
                               np.asarray(valuenet_ref(obs_big, params)),
                               rtol=5e-2, atol=5e-2)

    print("KERNEL_OK")
</pallas_src>

<mosaic_0001>
module attributes {stable_mosaic.version = 11 : i64} {
  func.func @_valuenet_kernel(%arg0: i32, %arg1: memref<16x128xbf16, #tpu.memory_space<vmem>>, %arg2: memref<128x16xbf16, #tpu.memory_space<vmem>>, %arg3: memref<128x1xf32, #tpu.memory_space<vmem>>, %arg4: memref<128x128xbf16, #tpu.memory_space<vmem>>, %arg5: memref<128x1xf32, #tpu.memory_space<vmem>>, %arg6: memref<128x1xf32, #tpu.memory_space<vmem>>, %arg7: memref<1x128xf32, #tpu.memory_space<vmem>>) attributes {dimension_semantics = [#tpu.dimension_semantics<parallel>], iteration_bounds = array<i64: 1>, scalar_prefetch = 0 : i64, scratch_operands = 0 : i64, tpu.core_type = #tpu.core_type<tc>, window_params = [{transform_indices = @transform_0, window_bounds = array<i64: 16, 128>}, {pipeline_mode = #tpu.pipeline_mode<synchronous>, transform_indices = @transform_1, window_bounds = array<i64: 128, 16>}, {pipeline_mode = #tpu.pipeline_mode<synchronous>, transform_indices = @transform_2, window_bounds = array<i64: 128, 1>}, {pipeline_mode = #tpu.pipeline_mode<synchronous>, transform_indices = @transform_3, window_bounds = array<i64: 128, 128>}, {pipeline_mode = #tpu.pipeline_mode<synchronous>, transform_indices = @transform_4, window_bounds = array<i64: 128, 1>}, {pipeline_mode = #tpu.pipeline_mode<synchronous>, transform_indices = @transform_5, window_bounds = array<i64: 128, 1>}, {transform_indices = @transform_6, window_bounds = array<i64: 1, 128>}]} {
    %c0 = arith.constant 0 : index
    %c0_0 = arith.constant 0 : index
    %0 = vector.load %arg1[%c0, %c0_0] : memref<16x128xbf16, #tpu.memory_space<vmem>>, vector<16x128xbf16>
    %c0_1 = arith.constant 0 : index
    %c0_2 = arith.constant 0 : index
    %1 = vector.load %arg2[%c0_1, %c0_2] : memref<128x16xbf16, #tpu.memory_space<vmem>>, vector<128x16xbf16>
    %cst = arith.constant dense<0.000000e+00> : vector<128x128xf32>
    %2 = tpu.matmul %1, %0, %cst {dimension_numbers = #tpu.dot_dimension_numbers<[1], [0], [0], [1], [0, 0, 1, 1], [], []>} : vector<128x16xbf16>, vector<16x128xbf16>, vector<128x128xf32> -> vector<128x128xf32>
    %c0_3 = arith.constant 0 : index
    %c0_4 = arith.constant 0 : index
    %3 = vector.load %arg3[%c0_3, %c0_4] : memref<128x1xf32, #tpu.memory_space<vmem>>, vector<128x1xf32>
    %4 = vector.broadcast %3 : vector<128x1xf32> to vector<128x128xf32>
    %5 = arith.addf %2, %4 : vector<128x128xf32>
    %cst_5 = arith.constant 0.000000e+00 : f32
    %6 = vector.broadcast %cst_5 : f32 to vector<128x128xf32>
    %7 = arith.maximumf %5, %6 : vector<128x128xf32>
    %c0_6 = arith.constant 0 : index
    %c0_7 = arith.constant 0 : index
    %8 = vector.load %arg4[%c0_6, %c0_7] : memref<128x128xbf16, #tpu.memory_space<vmem>>, vector<128x128xbf16>
    %9 = arith.truncf %7 : vector<128x128xf32> to vector<128x128xbf16>
    %cst_8 = arith.constant dense<0.000000e+00> : vector<128x128xf32>
    %10 = tpu.matmul %8, %9, %cst_8 {dimension_numbers = #tpu.dot_dimension_numbers<[1], [0], [0], [1], [0, 0, 1, 1], [], []>} : vector<128x128xbf16>, vector<128x128xbf16>, vector<128x128xf32> -> vector<128x128xf32>
    %c0_9 = arith.constant 0 : index
    %c0_10 = arith.constant 0 : index
    %11 = vector.load %arg5[%c0_9, %c0_10] : memref<128x1xf32, #tpu.memory_space<vmem>>, vector<128x1xf32>
    %12 = vector.broadcast %11 : vector<128x1xf32> to vector<128x128xf32>
    %13 = arith.addf %10, %12 : vector<128x128xf32>
    %cst_11 = arith.constant 0.000000e+00 : f32
    %14 = vector.broadcast %cst_11 : f32 to vector<128x128xf32>
    %15 = arith.maximumf %13, %14 : vector<128x128xf32>
    %c0_12 = arith.constant 0 : index
    %c0_13 = arith.constant 0 : index
    %16 = vector.load %arg6[%c0_12, %c0_13] : memref<128x1xf32, #tpu.memory_space<vmem>>, vector<128x1xf32>
    %17 = vector.broadcast %16 : vector<128x1xf32> to vector<128x128xf32>
    %18 = arith.mulf %15, %17 : vector<128x128xf32>
    %cst_14 = arith.constant dense<0.000000e+00> : vector<128xf32>
    %19 = vector.multi_reduction <add>, %18, %cst_14 [0] : vector<128x128xf32> to vector<128xf32>
    %20 = vector.shape_cast %19 : vector<128xf32> to vector<1x128xf32>
    %c0_15 = arith.constant 0 : index
    %c0_16 = arith.constant 0 : index
    %21 = vector.load %arg7[%c0_15, %c0_16] : memref<1x128xf32, #tpu.memory_space<vmem>>, vector<1x128xf32>
    tpu.vector_store %arg7[%c0_15, %c0_16], %20 {strides = array<i32>} : memref<1x128xf32, #tpu.memory_space<vmem>>, vector<1x128xf32>,
    return
  }
  func.func @transform_0(%arg0: i32) -> (i32, i32) {
    %c0_i32 = arith.constant 0 : i32
    %c0_i32_0 = arith.constant 0 : i32
    return %c0_i32, %arg0 : i32, i32
  }
  func.func @transform_1(%arg0: i32) -> (i32, i32) {
    %c0_i32 = arith.constant 0 : i32
    %c0_i32_0 = arith.constant 0 : i32
    %c0_i32_1 = arith.constant 0 : i32
    return %c0_i32, %c0_i32_0 : i32, i32
  }
  func.func @transform_2(%arg0: i32) -> (i32, i32) {
    %c0_i32 = arith.constant 0 : i32
    %c0_i32_0 = arith.constant 0 : i32
    %c0_i32_1 = arith.constant 0 : i32
    return %c0_i32, %c0_i32_0 : i32, i32
  }
  func.func @transform_3(%arg0: i32) -> (i32, i32) {
    %c0_i32 = arith.constant 0 : i32
    %c0_i32_0 = arith.constant 0 : i32
    %c0_i32_1 = arith.constant 0 : i32
    return %c0_i32, %c0_i32_0 : i32, i32
  }
  func.func @transform_4(%arg0: i32) -> (i32, i32) {
    %c0_i32 = arith.constant 0 : i32
    %c0_i32_0 = arith.constant 0 : i32
    %c0_i32_1 = arith.constant 0 : i32
    return %c0_i32, %c0_i32_0 : i32, i32
  }
  func.func @transform_5(%arg0: i32) -> (i32, i32) {
    %c0_i32 = arith.constant 0 : i32
    %c0_i32_0 = arith.constant 0 : i32
    %c0_i32_1 = arith.constant 0 : i32
    return %c0_i32, %c0_i32_0 : i32, i32
  }
  func.func @transform_6(%arg0: i32) -> (i32, i32) {
    %c0_i32 = arith.constant 0 : i32
    %c0_i32_0 = arith.constant 0 : i32
    return %c0_i32, %arg0 : i32, i32
  }
}

</mosaic_0001>

<llo_original>
// kernel: valuenet_forward.1
$region0: #{valuenet_forward.1}
  #allocation0 [shape = 'u32[]', space=smem, size = 0x4, offset = 0x4, fixed_abs, tag = 'smem constant byte address 0x4 - core index']
  #allocation1 [shape = 'u32[144,128]{1,0:T(1,128)}', space=vmem, size = 0x12000, scoped, tag = 'internal scratch']
  %s0 = inlined_call_operand.vmem [shape: bf16[16,128], index: 0, kind: input, shape index: {}]
  %s1 = inlined_call_operand.vmem [shape: bf16[128,16], index: 1, kind: input, shape index: {}]
  %s2 = inlined_call_operand.vmem [shape: f32[128,1], index: 2, kind: input, shape index: {}]
  %s3 = inlined_call_operand.vmem [shape: bf16[128,128], index: 3, kind: input, shape index: {}]
  %s4 = inlined_call_operand.vmem [shape: f32[128,1], index: 4, kind: input, shape index: {}]
  %s5 = inlined_call_operand.vmem [shape: f32[128,1], index: 5, kind: input, shape index: {}]
  %s6 = inlined_call_operand.vmem [shape: f32[1,128], index: 6, kind: output, shape index: {}]
  %s7 = sld [smem:[#allocation0]]
  $region34: #{valuenet_forward.1} parent=0
    _
  %s9 = ssub.s32 1, %s7
  %s10 = scalar_select 0, %s9, %s7
  // Predicated region
  $region2: #{valuenet_forward.1} parent=0 // pred_check
    _
  $region3: #{valuenet_forward.1} parent=0 // pred_check_branch
    %12 = sbr.rel (0) target = $region5
  $region4: #{valuenet_forward.1} parent=0 // pred_region
    _
  $region5: #{valuenet_forward.1} parent=0 // pred_fallthru
    _
  // Predicated region
  $region6: #{valuenet_forward.1} parent=0 // pred_check
    _
  $region7: #{valuenet_forward.1} parent=0 // pred_check_branch
    %14 = sbr.rel (0) target = $region9
  $region8: #{valuenet_forward.1} parent=0 // pred_region
    _
  $region9: #{valuenet_forward.1} parent=0 // pred_fallthru
    _
  // Predicated region
  $region10: #{valuenet_forward.1} parent=0 // pred_check
    _
  $region11: #{valuenet_forward.1} parent=0 // pred_check_branch
    %16 = sbr.rel (0) target = $region13
  $region12: #{valuenet_forward.1} parent=0 // pred_region
    _
  $region13: #{valuenet_forward.1} parent=0 // pred_fallthru
    _
  // Predicated region
  $region14: #{valuenet_forward.1} parent=0 // pred_check
    _
  $region15: #{valuenet_forward.1} parent=0 // pred_check_branch
    %18 = sbr.rel (0) target = $region17
  $region16: #{valuenet_forward.1} parent=0 // pred_region
    _
  $region17: #{valuenet_forward.1} parent=0 // pred_fallthru
    _
  // Predicated region
  $region18: #{valuenet_forward.1} parent=0 // pred_check
    _
  $region19: #{valuenet_forward.1} parent=0 // pred_check_branch
    %20 = sbr.rel (0) target = $region21
  $region20: #{valuenet_forward.1} parent=0 // pred_region
    _
  $region21: #{valuenet_forward.1} parent=0 // pred_fallthru
    _
  // Predicated region
  $region22: #{valuenet_forward.1} parent=0 // pred_check
    _
  $region23: #{valuenet_forward.1} parent=0 // pred_check_branch
    %22 = sbr.rel (0) target = $region25
  $region24: #{valuenet_forward.1} parent=0 // pred_region
    _
  $region25: #{valuenet_forward.1} parent=0 // pred_fallthru
    _
  %v24 = vld [vmem:[%s0] sm:$0xf]
  %v25 = vld [vmem:[%s0 + $0x4] sm:$0xf]
  %v26 = vld [vmem:[%s1] sm:$0xf]
  %v27 = vld [vmem:[%s1 + $0x4] sm:$0xf]
  %v28 = vld [vmem:[%s1 + $0x8] sm:$0xf]
  %v29 = vld [vmem:[%s1 + $0xc] sm:$0xf]
  %v30 = vld [vmem:[%s1 + $0x10] sm:$0xf]
  %v31 = vld [vmem:[%s1 + $0x14] sm:$0xf]
  %v32 = vld [vmem:[%s1 + $0x18] sm:$0xf]
  %v33 = vld [vmem:[%s1 + $0x1c] sm:$0xf]
  %v34 = vld [vmem:[%s1 + $0x20] sm:$0xf]
  %v35 = vld [vmem:[%s1 + $0x24] sm:$0xf]
  %v36 = vld [vmem:[%s1 + $0x28] sm:$0xf]
  %v37 = vld [vmem:[%s1 + $0x2c] sm:$0xf]
  %v38 = vld [vmem:[%s1 + $0x30] sm:$0xf]
  %v39 = vld [vmem:[%s1 + $0x34] sm:$0xf]
  %v40 = vld [vmem:[%s1 + $0x38] sm:$0xf]
  %v41 = vld [vmem:[%s1 + $0x3c] sm:$0xf]
  %v42 = vld [vmem:[%s2] sm:$0xff]
  %v43 = vld [vmem:[%s2 + $0x8] sm:$0xff]
  %v44 = vld [vmem:[%s2 + $0x10] sm:$0xff]
  %v45 = vld [vmem:[%s2 + $0x18] sm:$0xff]
  %v46 = vld [vmem:[%s2 + $0x20] sm:$0xff]
  %v47 = vld [vmem:[%s2 + $0x28] sm:$0xff]
  %v48 = vld [vmem:[%s2 + $0x30] sm:$0xff]
  %v49 = vld [vmem:[%s2 + $0x38] sm:$0xff]
  %v50 = vld [vmem:[%s2 + $0x40] sm:$0xff]
  %v51 = vld [vmem:[%s2 + $0x48] sm:$0xff]
  %v52 = vld [vmem:[%s2 + $0x50] sm:$0xff]
  %v53 = vld [vmem:[%s2 + $0x58] sm:$0xff]
  %v54 = vld [vmem:[%s2 + $0x60] sm:$0xff]
  %v55 = vld [vmem:[%s2 + $0x68] sm:$0xff]
  %v56 = vld [vmem:[%s2 + $0x70] sm:$0xff]
  %v57 = vld [vmem:[%s2 + $0x78] sm:$0xff]
  %59 = vset.pattern.permute.xlu0 0
  %60 = vperm.xlu0 %59, %v42
  %v61 = vpop.permute.xlu0 %60
  %64 = vset.pattern.permute.xlu0 0
  %65 = vperm.xlu0 %64, %v43
  %v66 = vpop.permute.xlu0 %65
  %69 = vset.pattern.permute.xlu0 0
  %70 = vperm.xlu0 %69, %v44
  %v71 = vpop.permute.xlu0 %70
  %74 = vset.pattern.permute.xlu0 0
  %75 = vperm.xlu0 %74, %v45
  %v76 = vpop.permute.xlu0 %75
  %79 = vset.pattern.permute.xlu0 0
  %80 = vperm.xlu0 %79, %v46
  %v81 = vpop.permute.xlu0 %80
  %84 = vset.pattern.permute.xlu0 0
  %85 = vperm.xlu0 %84, %v47
  %v86 = vpop.permute.xlu0 %85
  %89 = vset.pattern.permute.xlu0 0
  %90 = vperm.xlu0 %89, %v48
  %v91 = vpop.permute.xlu0 %90
  %94 = vset.pattern.permute.xlu0 0
  %95 = vperm.xlu0 %94, %v49
  %v96 = vpop.permute.xlu0 %95
  %99 = vset.pattern.permute.xlu0 0
  %100 = vperm.xlu0 %99, %v50
  %v101 = vpop.permute.xlu0 %100
  %104 = vset.pattern.permute.xlu0 0
  %105 = vperm.xlu0 %104, %v51
  %v106 = vpop.permute.xlu0 %105
  %109 = vset.pattern.permute.xlu0 0
  %110 = vperm.xlu0 %109, %v52
  %v111 = vpop.permute.xlu0 %110
  %114 = vset.pattern.permute.xlu0 0
  %115 = vperm.xlu0 %114, %v53
  %v116 = vpop.permute.xlu0 %115
  %119 = vset.pattern.permute.xlu0 0
  %120 = vperm.xlu0 %119, %v54
  %v121 = vpop.permute.xlu0 %120
  %124 = vset.pattern.permute.xlu0 0
  %125 = vperm.xlu0 %124, %v55
  %v126 = vpop.permute.xlu0 %125
  %129 = vset.pattern.permute.xlu0 0
  %130 = vperm.xlu0 %129, %v56
  %v131 = vpop.permute.xlu0 %130
  %134 = vset.pattern.permute.xlu0 0
  %135 = vperm.xlu0 %134, %v57
  %v136 = vpop.permute.xlu0 %135
  %v154 = vunpack.c.l.b16 %v26
  %v155 = vunpack.c.l.b16 %v27
  %v156 = vunpack.c.l.b16 %v28
  %v157 = vunpack.c.l.b16 %v29
  %v158 = vunpack.c.l.b16 %v30
  %v159 = vunpack.c.l.b16 %v31
  %v160 = vunpack.c.l.b16 %v32
  %v161 = vunpack.c.l.b16 %v33
  %v162 = vunpack.c.l.b16 %v34
  %v163 = vunpack.c.l.b16 %v35
  %v164 = vunpack.c.l.b16 %v36
  %v165 = vunpack.c.l.b16 %v37
  %v166 = vunpack.c.l.b16 %v38
  %v167 = vunpack.c.l.b16 %v39
  %v168 = vunpack.c.l.b16 %v40
  %v169 = vunpack.c.l.b16 %v41
  %v170 = vpack.c.b16 %v155, %v154
  %v171 = vpack.c.b16 %v157, %v156
  %v172 = vpack.c.b16 %v159, %v158
  %v173 = vpack.c.b16 %v161, %v160
  %v174 = vpack.c.b16 %v163, %v162
  %v175 = vpack.c.b16 %v165, %v164
  %v176 = vpack.c.b16 %v167, %v166
  %v177 = vpack.c.b16 %v169, %v168
  %v180 = vunpack.c.l.b16 %v24
  %v181 = vunpack.c.l.b16 %v25
  %v182 = vpack.c.b16 %v181, %v180
  %vm184 = vcmask 130048
  %v186 = vsel %vm184, %v170, 0
  %v189 = vsel %vm184, %v171, 0
  %v192 = vsel %vm184, %v172, 0
  %v195 = vsel %vm184, %v173, 0
  %v198 = vsel %vm184, %v174, 0
  %v201 = vsel %vm184, %v175, 0
  %v204 = vsel %vm184, %v176, 0
  %v207 = vsel %vm184, %v177, 0
  %209 = vmatprep.subr.bf16.mxu0 0
  %210 = vmatpush1.bf16.msra.mxu0 %v182
  %211 = vmatprep.subr.bf16.mxu0 0
  %212 = vmatpush1.bf16.msra.mxu0 0
  %213 = vmatprep.subr.bf16.mxu0 0
  %214 = vmatpush1.bf16.msra.mxu0 0
  %215 = vmatprep.subr.bf16.mxu0 0
  %216 = vmatpush1.bf16.msra.mxu0 0
  %217 = vmatprep.subr.bf16.mxu0 0
  %218 = vmatpush1.bf16.msra.mxu0 0
  %219 = vmatprep.subr.bf16.mxu0 0
  %220 = vmatpush1.bf16.msra.mxu0 0
  %221 = vmatprep.subr.bf16.mxu0 0
  %222 = vmatpush1.bf16.msra.mxu0 0
  %223 = vmatprep.subr.bf16.mxu0 0
  %224 = vmatpush1.bf16.msra.mxu0 0
  %225 = vmatprep.subr.bf16.mxu0 0
  %226 = vmatpush1.bf16.msra.mxu0 0
  %227 = vmatprep.subr.bf16.mxu0 0
  %228 = vmatpush1.bf16.msra.mxu0 0
  %229 = vmatprep.subr.bf16.mxu0 0
  %230 = vmatpush1.bf16.msra.mxu0 0
  %231 = vmatprep.subr.bf16.mxu0 0
  %232 = vmatpush1.bf16.msra.mxu0 0
  %233 = vmatprep.subr.bf16.mxu0 0
  %234 = vmatpush1.bf16.msra.mxu0 0
  %235 = vmatprep.subr.bf16.mxu0 0
  %236 = vmatpush1.bf16.msra.mxu0 0
  %237 = vmatprep.subr.bf16.mxu0 0
  %238 = vmatpush1.bf16.msra.mxu0 0
  %239 = vmatprep.subr.bf16.mxu0 0
  %240 = vmatpush1.bf16.msra.mxu0 0
  %241 = vmatprep.mubr.bf16.mxu0 0
  %242 = vmatmul.mubr.bf16.gmra.mrb[0].mxu0 %v186
  %v243 = vpop.f32.mrb[0].mxu0
  %v244 = vadd.f32 %v61, %v243
  %v245 = vpop.f32.mrb[0].mxu0
  %v246 = vpop.f32.mrb[0].mxu0
  %v247 = vadd.f32 %v66, %v246
  %v248 = vpop.f32.mrb[0].mxu0
  %249 = vmatprep.mubr.bf16.mxu0 0
  %250 = vmatmul.mubr.bf16.gmra.mrb[0].mxu0 %v189
  %v251 = vpop.f32.mrb[0].mxu0
  %v252 = vadd.f32 %v71, %v251
  %v253 = vpop.f32.mrb[0].mxu0
  %v254 = vpop.f32.mrb[0].mxu0
  %v255 = vadd.f32 %v76, %v254
  %v256 = vpop.f32.mrb[0].mxu0
  %257 = vmatprep.mubr.bf16.mxu0 0
  %258 = vmatmul.mubr.bf16.gmra.mrb[0].mxu0 %v192
  %v259 = vpop.f32.mrb[0].mxu0
  %v260 = vadd.f32 %v81, %v259
  %v261 = vpop.f32.mrb[0].mxu0
  %v262 = vpop.f32.mrb[0].mxu0
  %v263 = vadd.f32 %v86, %v262
  %v264 = vpop.f32.mrb[0].mxu0
  %265 = vmatprep.mubr.bf16.mxu0 0
  %266 = vmatmul.mubr.bf16.gmra.mrb[0].mxu0 %v195
  %v267 = vpop.f32.mrb[0].mxu0
  %v268 = vadd.f32 %v91, %v267
  %v269 = vpop.f32.mrb[0].mxu0
  %v270 = vpop.f32.mrb[0].mxu0
  %v271 = vadd.f32 %v96, %v270
  %v272 = vpop.f32.mrb[0].mxu0
  %273 = vmatprep.mubr.bf16.mxu0 0
  %274 = vmatmul.mubr.bf16.gmra.mrb[0].mxu0 %v198
  %v275 = vpop.f32.mrb[0].mxu0
  %v276 = vadd.f32 %v101, %v275
  %v277 = vpop.f32.mrb[0].mxu0
  %v278 = vpop.f32.mrb[0].mxu0
  %v279 = vadd.f32 %v106, %v278
  %v280 = vpop.f32.mrb[0].mxu0
  %281 = vmatprep.mubr.bf16.mxu0 0
  %282 = vmatmul.mubr.bf16.gmra.mrb[0].mxu0 %v201
  %v283 = vpop.f32.mrb[0].mxu0
  %v284 = vadd.f32 %v111, %v283
  %v285 = vpop.f32.mrb[0].mxu0
  %v286 = vpop.f32.mrb[0].mxu0
  %v287 = vadd.f32 %v116, %v286
  %v288 = vpop.f32.mrb[0].mxu0
  %289 = vmatprep.mubr.bf16.mxu0 0
  %290 = vmatmul.mubr.bf16.gmra.mrb[0].mxu0 %v204
  %v291 = vpop.f32.mrb[0].mxu0
  %v292 = vadd.f32 %v121, %v291
  %v293 = vpop.f32.mrb[0].mxu0
  %v294 = vpop.f32.mrb[0].mxu0
  %v295 = vadd.f32 %v126, %v294
  %v296 = vpop.f32.mrb[0].mxu0
  %297 = vmatprep.mubr.bf16.mxu0 0
  %298 = vmatmul.mubr.bf16.gmra.mrb[0].mxu0 %v207
  %v299 = vpop.f32.mrb[0].mxu0
  %v300 = vadd.f32 %v131, %v299
  %v301 = vpop.f32.mrb[0].mxu0
  %v302 = vpop.f32.mrb[0].mxu0
  %v303 = vadd.f32 %v136, %v302
  %v304 = vpop.f32.mrb[0].mxu0
  %305 = vdwg.mxu0
  %v306 = vmax.f32 %v244, 0.0
  %v307 = vmax.f32 %v247, 0.0
  %v308 = vmax.f32 %v252, 0.0
  %v309 = vmax.f32 %v255, 0.0
  %v310 = vmax.f32 %v260, 0.0
  %v311 = vmax.f32 %v263, 0.0
  %v312 = vmax.f32 %v268, 0.0
  %v313 = vmax.f32 %v271, 0.0
  %v314 = vmax.f32 %v276, 0.0
  %v315 = vmax.f32 %v279, 0.0
  %v316 = vmax.f32 %v284, 0.0
  %v317 = vmax.f32 %v287, 0.0
  %v318 = vmax.f32 %v292, 0.0
  %v319 = vmax.f32 %v295, 0.0
  %v320 = vmax.f32 %v300, 0.0
  %v321 = vmax.f32 %v303, 0.0
  %v322 = vld [vmem:[%s3] sm:$0xf]
  %v323 = vld [vmem:[%s3 + $0x4] sm:$0xf]
  %v324 = vld [vmem:[%s3 + $0x8] sm:$0xf]
  %v325 = vld [vmem:[%s3 + $0xc] sm:$0xf]
  %v326 = vld [vmem:[%s3 + $0x10] sm:$0xf]
  %v327 = vld [vmem:[%s3 + $0x14] sm:$0xf]
  %v328 = vld [vmem:[%s3 + $0x18] sm:$0xf]
  %v329 = vld [vmem:[%s3 + $0x1c] sm:$0xf]
  %v330 = vld [vmem:[%s3 + $0x20] sm:$0xf]
  %v331 = vld [vmem:[%s3 + $0x24] sm:$0xf]
  %v332 = vld [vmem:[%s3 + $0x28] sm:$0xf]
  %v333 = vld [vmem:[%s3 + $0x2c] sm:$0xf]
  %v334 = vld [vmem:[%s3 + $0x30] sm:$0xf]
  %v335 = vld [vmem:[%s3 + $0x34] sm:$0xf]
  %v336 = vld [vmem:[%s3 + $0x38] sm:$0xf]
  %v337 = vld [vmem:[%s3 + $0x3c] sm:$0xf]
  %v338 = vpack.c.bf16 %v307, %v306
  %v339 = vpack.c.bf16 %v309, %v308
  %v340 = vpack.c.bf16 %v311, %v310
  %v341 = vpack.c.bf16 %v313, %v312
  %v342 = vpack.c.bf16 %v315, %v314
  %v343 = vpack.c.bf16 %v317, %v316
  %v344 = vpack.c.bf16 %v319, %v318
  %v345 = vpack.c.bf16 %v321, %v320
  %v346 = vld [vmem:[%s4] sm:$0xff]
  %v347 = vld [vmem:[%s4 + $0x8] sm:$0xff]
  %v348 = vld [vmem:[%s4 + $0x10] sm:$0xff]
  %v349 = vld [vmem:[%s4 + $0x18] sm:$0xff]
  %v350 = vld [vmem:[%s4 + $0x20] sm:$0xff]
  %v351 = vld [vmem:[%s4 + $0x28] sm:$0xff]
  %v352 = vld [vmem:[%s4 + $0x30] sm:$0xff]
  %v353 = vld [vmem:[%s4 + $0x38] sm:$0xff]
  %v354 = vld [vmem:[%s4 + $0x40] sm:$0xff]
  %v355 = vld [vmem:[%s4 + $0x48] sm:$0xff]
  %v356 = vld [vmem:[%s4 + $0x50] sm:$0xff]
  %v357 = vld [vmem:[%s4 + $0x58] sm:$0xff]
  %v358 = vld [vmem:[%s4 + $0x60] sm:$0xff]
  %v359 = vld [vmem:[%s4 + $0x68] sm:$0xff]
  %v360 = vld [vmem:[%s4 + $0x70] sm:$0xff]
  %v361 = vld [vmem:[%s4 + $0x78] sm:$0xff]
  %363 = vset.pattern.permute.xlu0 0
  %364 = vperm.xlu0 %363, %v346
  %v365 = vpop.permute.xlu0 %364
  %368 = vset.pattern.permute.xlu0 0
  %369 = vperm.xlu0 %368, %v347
  %v370 = vpop.permute.xlu0 %369
  %373 = vset.pattern.permute.xlu0 0
  %374 = vperm.xlu0 %373, %v348
  %v375 = vpop.permute.xlu0 %374
  %378 = vset.pattern.permute.xlu0 0
  %379 = vperm.xlu0 %378, %v349
  %v380 = vpop.permute.xlu0 %379
  %383 = vset.pattern.permute.xlu0 0
  %384 = vperm.xlu0 %383, %v350
  %v385 = vpop.permute.xlu0 %384
  %388 = vset.pattern.permute.xlu0 0
  %389 = vperm.xlu0 %388, %v351
  %v390 = vpop.permute.xlu0 %389
  %393 = vset.pattern.permute.xlu0 0
  %394 = vperm.xlu0 %393, %v352
  %v395 = vpop.permute.xlu0 %394
  %398 = vset.pattern.permute.xlu0 0
  %399 = vperm.xlu0 %398, %v353
  %v400 = vpop.permute.xlu0 %399
  %403 = vset.pattern.permute.xlu0 0
  %404 = vperm.xlu0 %403, %v354
  %v405 = vpop.permute.xlu0 %404
  %408 = vset.pattern.permute.xlu0 0
  %409 = vperm.xlu0 %408, %v355
  %v410 = vpop.permute.xlu0 %409
  %413 = vset.pattern.permute.xlu0 0
  %414 = vperm.xlu0 %413, %v356
  %v415 = vpop.permute.xlu0 %414
  %418 = vset.pattern.permute.xlu0 0
  %419 = vperm.xlu0 %418, %v357
  %v420 = vpop.permute.xlu0 %419
  %423 = vset.pattern.permute.xlu0 0
  %424 = vperm.xlu0 %423, %v358
  %v425 = vpop.permute.xlu0 %424
  %428 = vset.pattern.permute.xlu0 0
  %429 = vperm.xlu0 %428, %v359
  %v430 = vpop.permute.xlu0 %429
  %433 = vset.pattern.permute.xlu0 0
  %434 = vperm.xlu0 %433, %v360
  %v435 = vpop.permute.xlu0 %434
  %438 = vset.pattern.permute.xlu0 0
  %439 = vperm.xlu0 %438, %v361
  %v440 = vpop.permute.xlu0 %439
  %v458 = vunpack.c.l.b16 %v322
  %v459 = vunpack.c.l.b16 %v323
  %v460 = vunpack.c.l.b16 %v324
  %v461 = vunpack.c.l.b16 %v325
  %v462 = vunpack.c.l.b16 %v326
  %v463 = vunpack.c.l.b16 %v327
  %v464 = vunpack.c.l.b16 %v328
  %v465 = vunpack.c.l.b16 %v329
  %v466 = vunpack.c.l.b16 %v330
  %v467 = vunpack.c.l.b16 %v331
  %v468 = vunpack.c.l.b16 %v332
  %v469 = vunpack.c.l.b16 %v333
  %v470 = vunpack.c.l.b16 %v334
  %v471 = vunpack.c.l.b16 %v335
  %v472 = vunpack.c.l.b16 %v336
  %v473 = vunpack.c.l.b16 %v337
  %v474 = vpack.c.b16 %v459, %v458
  %v475 = vpack.c.b16 %v461, %v460
  %v476 = vpack.c.b16 %v463, %v462
  %v477 = vpack.c.b16 %v465, %v464
  %v478 = vpack.c.b16 %v467, %v466
  %v479 = vpack.c.b16 %v469, %v468
  %v480 = vpack.c.b16 %v471, %v470
  %v481 = vpack.c.b16 %v473, %v472
  %490 = vmatprep.subr.bf16.mxu0 0
  %491 = vmatpush1.bf16.msra.mxu0 %v338
  %492 = vmatprep.subr.bf16.mxu0 0
  %493 = vmatpush1.bf16.msra.mxu0 %v339
  %494 = vmatprep.subr.bf16.mxu0 0
  %495 = vmatpush1.bf16.msra.mxu0 %v340
  %496 = vmatprep.subr.bf16.mxu0 0
  %497 = vmatpush1.bf16.msra.mxu0 %v341
  %498 = vmatprep.subr.bf16.mxu0 0
  %499 = vmatpush1.bf16.msra.mxu0 %v342
  %500 = vmatprep.subr.bf16.mxu0 0
  %501 = vmatpush1.bf16.msra.mxu0 %v343
  %502 = vmatprep.subr.bf16.mxu0 0
  %503 = vmatpush1.bf16.msra.mxu0 %v344
  %504 = vmatprep.subr.bf16.mxu0 0
  %505 = vmatpush1.bf16.msra.mxu0 %v345
  %506 = vmatprep.subr.bf16.mxu0 0
  %507 = vmatpush1.bf16.msra.mxu0 0
  %508 = vmatprep.subr.bf16.mxu0 0
  %509 = vmatpush1.bf16.msra.mxu0 0
  %510 = vmatprep.subr.bf16.mxu0 0
  %511 = vmatpush1.bf16.msra.mxu0 0
  %512 = vmatprep.subr.bf16.mxu0 0
  %513 = vmatpush1.bf16.msra.mxu0 0
  %514 = vmatprep.subr.bf16.mxu0 0
  %515 = vmatpush1.bf16.msra.mxu0 0
  %516 = vmatprep.subr.bf16.mxu0 0
  %517 = vmatpush1.bf16.msra.mxu0 0
  %518 = vmatprep.subr.bf16.mxu0 0
  %519 = vmatpush1.bf16.msra.mxu0 0
  %520 = vmatprep.subr.bf16.mxu0 0
  %521 = vmatpush1.bf16.msra.mxu0 0
  %522 = vmatprep.mubr.bf16.mxu0 0
  %523 = vmatmul.mubr.bf16.gmra.mrb[0].mxu0 %v474
  %v524 = vpop.f32.mrb[0].mxu0
  %v525 = vadd.f32 %v365, %v524
  %v526 = vpop.f32.mrb[0].mxu0
  %v527 = vpop.f32.mrb[0].mxu0
  %v528 = vadd.f32 %v370, %v527
  %v529 = vpop.f32.mrb[0].mxu0
  %530 = vmatprep.mubr.bf16.mxu0 0
  %531 = vmatmul.mubr.bf16.gmra.mrb[0].mxu0 %v475
  %v532 = vpop.f32.mrb[0].mxu0
  %v533 = vadd.f32 %v375, %v532
  %v534 = vpop.f32.mrb[0].mxu0
  %v535 = vpop.f32.mrb[0].mxu0
  %v536 = vadd.f32 %v380, %v535
  %v537 = vpop.f32.mrb[0].mxu0
  %538 = vmatprep.mubr.bf16.mxu0 0
  %539 = vmatmul.mubr.bf16.gmra.mrb[0].mxu0 %v476
  %v540 = vpop.f32.mrb[0].mxu0
  %v541 = vadd.f32 %v385, %v540
  %v542 = vpop.f32.mrb[0].mxu0
  %v543 = vpop.f32.mrb[0].mxu0
  %v544 = vadd.f32 %v390, %v543
  %v545 = vpop.f32.mrb[0].mxu0
  %546 = vmatprep.mubr.bf16.mxu0 0
  %547 = vmatmul.mubr.bf16.gmra.mrb[0].mxu0 %v477
  %v548 = vpop.f32.mrb[0].mxu0
  %v549 = vadd.f32 %v395, %v548
  %v550 = vpop.f32.mrb[0].mxu0
  %v551 = vpop.f32.mrb[0].mxu0
  %v552 = vadd.f32 %v400, %v551
  %v553 = vpop.f32.mrb[0].mxu0
  %554 = vmatprep.mubr.bf16.mxu0 0
  %555 = vmatmul.mubr.bf16.gmra.mrb[0].mxu0 %v478
  %v556 = vpop.f32.mrb[0].mxu0
  %v557 = vadd.f32 %v405, %v556
  %v558 = vpop.f32.mrb[0].mxu0
  %v559 = vpop.f32.mrb[0].mxu0
  %v560 = vadd.f32 %v410, %v559
  %v561 = vpop.f32.mrb[0].mxu0
  %562 = vmatprep.mubr.bf16.mxu0 0
  %563 = vmatmul.mubr.bf16.gmra.mrb[0].mxu0 %v479
  %v564 = vpop.f32.mrb[0].mxu0
  %v565 = vadd.f32 %v415, %v564
  %v566 = vpop.f32.mrb[0].mxu0
  %v567 = vpop.f32.mrb[0].mxu0
  %v568 = vadd.f32 %v420, %v567
  %v569 = vpop.f32.mrb[0].mxu0
  %570 = vmatprep.mubr.bf16.mxu0 0
  %571 = vmatmul.mubr.bf16.gmra.mrb[0].mxu0 %v480
  %v572 = vpop.f32.mrb[0].mxu0
  %v573 = vadd.f32 %v425, %v572
  %v574 = vpop.f32.mrb[0].mxu0
  %v575 = vpop.f32.mrb[0].mxu0
  %v576 = vadd.f32 %v430, %v575
  %v577 = vpop.f32.mrb[0].mxu0
  %578 = vmatprep.mubr.bf16.mxu0 0
  %579 = vmatmul.mubr.bf16.gmra.mrb[0].mxu0 %v481
  %v580 = vpop.f32.mrb[0].mxu0
  %v581 = vadd.f32 %v435, %v580
  %v582 = vpop.f32.mrb[0].mxu0
  %v583 = vpop.f32.mrb[0].mxu0
  %v584 = vadd.f32 %v440, %v583
  %v585 = vpop.f32.mrb[0].mxu0
  %586 = vdwg.mxu0
  %v587 = vmax.f32 %v525, 0.0
  %v588 = vmax.f32 %v528, 0.0
  %v589 = vmax.f32 %v533, 0.0
  %v590 = vmax.f32 %v536, 0.0
  %v591 = vmax.f32 %v541, 0.0
  %v592 = vmax.f32 %v544, 0.0
  %v593 = vmax.f32 %v549, 0.0
  %v594 = vmax.f32 %v552, 0.0
  %v595 = vmax.f32 %v557, 0.0
  %v596 = vmax.f32 %v560, 0.0
  %v597 = vmax.f32 %v565, 0.0
  %v598 = vmax.f32 %v568, 0.0
  %v599 = vmax.f32 %v573, 0.0
  %v600 = vmax.f32 %v576, 0.0
  %v601 = vmax.f32 %v581, 0.0
  %v602 = vmax.f32 %v584, 0.0
  %v603 = vld [vmem:[%s5] sm:$0xff]
  %v604 = vld [vmem:[%s5 + $0x8] sm:$0xff]
  %v605 = vld [vmem:[%s5 + $0x10] sm:$0xff]
  %v606 = vld [vmem:[%s5 + $0x18] sm:$0xff]
  %v607 = vld [vmem:[%s5 + $0x20] sm:$0xff]
  %v608 = vld [vmem:[%s5 + $0x28] sm:$0xff]
  %v609 = vld [vmem:[%s5 + $0x30] sm:$0xff]
  %v610 = vld [vmem:[%s5 + $0x38] sm:$0xff]
  %v611 = vld [vmem:[%s5 + $0x40] sm:$0xff]
  %v612 = vld [vmem:[%s5 + $0x48] sm:$0xff]
  %v613 = vld [vmem:[%s5 + $0x50] sm:$0xff]
  %v614 = vld [vmem:[%s5 + $0x58] sm:$0xff]
  %v615 = vld [vmem:[%s5 + $0x60] sm:$0xff]
  %v616 = vld [vmem:[%s5 + $0x68] sm:$0xff]
  %v617 = vld [vmem:[%s5 + $0x70] sm:$0xff]
  %v618 = vld [vmem:[%s5 + $0x78] sm:$0xff]
  %620 = vset.pattern.permute.xlu0 0
  %621 = vperm.xlu0 %620, %v603
  %v622 = vpop.permute.xlu0 %621
  %625 = vset.pattern.permute.xlu0 0
  %626 = vperm.xlu0 %625, %v604
  %v627 = vpop.permute.xlu0 %626
  %630 = vset.pattern.permute.xlu0 0
  %631 = vperm.xlu0 %630, %v605
  %v632 = vpop.permute.xlu0 %631
  %635 = vset.pattern.permute.xlu0 0
  %636 = vperm.xlu0 %635, %v606
  %v637 = vpop.permute.xlu0 %636
  %640 = vset.pattern.permute.xlu0 0
  %641 = vperm.xlu0 %640, %v607
  %v642 = vpop.permute.xlu0 %641
  %645 = vset.pattern.permute.xlu0 0
  %646 = vperm.xlu0 %645, %v608
  %v647 = vpop.permute.xlu0 %646
  %650 = vset.pattern.permute.xlu0 0
  %651 = vperm.xlu0 %650, %v609
  %v652 = vpop.permute.xlu0 %651
  %655 = vset.pattern.permute.xlu0 0
  %656 = vperm.xlu0 %655, %v610
  %v657 = vpop.permute.xlu0 %656
  %660 = vset.pattern.permute.xlu0 0
  %661 = vperm.xlu0 %660, %v611
  %v662 = vpop.permute.xlu0 %661
  %665 = vset.pattern.permute.xlu0 0
  %666 = vperm.xlu0 %665, %v612
  %v667 = vpop.permute.xlu0 %666
  %670 = vset.pattern.permute.xlu0 0
  %671 = vperm.xlu0 %670, %v613
  %v672 = vpop.permute.xlu0 %671
  %675 = vset.pattern.permute.xlu0 0
  %676 = vperm.xlu0 %675, %v614
  %v677 = vpop.permute.xlu0 %676
  %680 = vset.pattern.permute.xlu0 0
  %681 = vperm.xlu0 %680, %v615
  %v682 = vpop.permute.xlu0 %681
  %685 = vset.pattern.permute.xlu0 0
  %686 = vperm.xlu0 %685, %v616
  %v687 = vpop.permute.xlu0 %686
  %690 = vset.pattern.permute.xlu0 0
  %691 = vperm.xlu0 %690, %v617
  %v692 = vpop.permute.xlu0 %691
  %695 = vset.pattern.permute.xlu0 0
  %696 = vperm.xlu0 %695, %v618
  %v697 = vpop.permute.xlu0 %696
  %v699 = vmul.f32 %v587, %v622
  %v700 = vmul.f32 %v588, %v627
  %v701 = vmul.f32 %v589, %v632
  %v702 = vmul.f32 %v590, %v637
  %v703 = vmul.f32 %v591, %v642
  %v704 = vmul.f32 %v592, %v647
  %v705 = vmul.f32 %v593, %v652
  %v706 = vmul.f32 %v594, %v657
  %v707 = vmul.f32 %v595, %v662
  %v708 = vmul.f32 %v596, %v667
  %v709 = vmul.f32 %v597, %v672
  %v710 = vmul.f32 %v598, %v677
  %v711 = vmul.f32 %v599, %v682
  %v712 = vmul.f32 %v600, %v687
  %v713 = vmul.f32 %v601, %v692
  %v714 = vmul.f32 %v602, %v697
  %v715 = vadd.f32 %v699, %v700
  %v716 = vadd.f32 %v715, %v701
  %v717 = vadd.f32 %v716, %v702
  %v718 = vadd.f32 %v717, %v703
  %v719 = vadd.f32 %v718, %v704
  %v720 = vadd.f32 %v719, %v705
  %v721 = vadd.f32 %v720, %v706
  %v722 = vadd.f32 %v721, %v707
  %v723 = vadd.f32 %v722, %v708
  %v724 = vadd.f32 %v723, %v709
  %v725 = vadd.f32 %v724, %v710
  %v726 = vadd.f32 %v725, %v711
  %v727 = vadd.f32 %v726, %v712
  %v728 = vadd.f32 %v727, %v713
  %v729 = vadd.f32 %v728, %v714
  %v730 = vrot.slane %v729, 4
  %v731 = vadd.f32 %v729, %v730
  %v732 = vrot.slane %v731, 2
  %v733 = vadd.f32 %v731, %v732
  %v734 = vrot.slane %v733, 1
  %v735 = vadd.f32 %v733, %v734
  %736 = vst [vmem:[%s6] sm:$0x1] %v735
  // Predicated region
  $region26: #{valuenet_forward.1} parent=0 // pred_check
    _
  $region27: #{valuenet_forward.1} parent=0 // pred_check_branch
    %738 = sbr.rel (0) target = $region29
  $region28: #{valuenet_forward.1} parent=0 // pred_region
    _
  $region29: #{valuenet_forward.1} parent=0 // pred_fallthru
    _
  // Predicated region
  $region30: #{valuenet_forward.1} parent=0 // pred_check
    _
  $region31: #{valuenet_forward.1} parent=0 // pred_check_branch
    %740 = sbr.rel (0) target = $region33
  $region32: #{valuenet_forward.1} parent=0 // pred_region
    _
  $region33: #{valuenet_forward.1} parent=0 // pred_fallthru
    _

</llo_original>
